<compile_context>
chip_gen: v7x
topology: tpu7x:2x2x1
jax: 0.10.0
libtpu: 0.0.40
codegen_flags: <defaults>
</compile_context>

<pallas_src>
import math

import jax
import jax.numpy as jnp
from jax.experimental import pallas as pl
from jax.experimental.pallas import tpu as pltpu

# --- small, module-consistent shapes -----------------------------------------
B = 2                      # batch
B_PAD = 8                  # sublane-padded batch (full (8,128) vreg tiles)
M = 8                      # latent dim
HID = 32                   # hidden width of each decoder MLP
C, IH, IW = 1, 16, 16      # output image (C, H, W)
D = C * IH * IW            # flattened event size = 256
NUM_DECODERS = 3
SCALE = 0.1
_LP_LANES = 128            # lane-dense width for the per-row log_prob output

_LOG_NORM_CONST = -math.log(SCALE) - 0.5 * math.log(2.0 * math.pi)

# whole-array memory-space specs (used by the tiny log_prob-only kernel)
_VMEM = pl.BlockSpec(memory_space=pltpu.MemorySpace.VMEM)


# --- shared in-kernel MLP (weights already selected by the BlockSpec index_map)
def _mlp(z_ref, w1_ref, b1_ref, w2_ref, b2_ref):
    # bf16 MXU inputs, f32 accumulation; biases and activations stay f32.
    z = z_ref[...].astype(jnp.bfloat16)                               # (B_PAD, M)
    h = jnp.dot(z, w1_ref[...], preferred_element_type=jnp.float32) + b1_ref[...]
    h = jnp.maximum(h, 0.0)                                           # ReLU, f32
    mu = jnp.dot(h.astype(jnp.bfloat16), w2_ref[...],
                 preferred_element_type=jnp.float32) + b2_ref[...]    # (B_PAD, D)
    return mu


def _logprob_from_mu(x_ref, mu, lp_ref):
    x = x_ref[...].astype(jnp.float32)                                # in-kernel cast
    zsc = (x - mu) * (1.0 / SCALE)                                    # (B_PAD, D)
    lp = jnp.sum(-0.5 * zsc * zsc + _LOG_NORM_CONST,
                 axis=-1, keepdims=True)                              # (B_PAD, 1)
    # lane-dense writeback: broadcast the per-row scalar across 128 lanes
    lp_ref[...] = jnp.broadcast_to(lp, lp_ref.shape).astype(lp_ref.dtype)


# --- kernel 1: decode only (z -> means_flat) ----------------------------------
def _decode_kernel(choice_ref, z_ref, w1_ref, b1_ref, w2_ref, b2_ref, means_ref):
    del choice_ref  # selection already resolved by the index_maps
    means_ref[...] = _mlp(z_ref, w1_ref, b1_ref, w2_ref, b2_ref).astype(means_ref.dtype)


# --- kernel 2: fused decode + Independent(Normal(mu, 0.1), 3).log_prob --------
def _decode_logprob_kernel(choice_ref, z_ref, w1_ref, b1_ref, w2_ref, b2_ref,
                           x_ref, means_ref, lp_ref):
    del choice_ref
    mu = _mlp(z_ref, w1_ref, b1_ref, w2_ref, b2_ref)
    means_ref[...] = mu.astype(means_ref.dtype)
    _logprob_from_mu(x_ref, mu, lp_ref)


# --- kernel 3: log_prob from already-decoded means (no weights, no MLP) -------
def _logprob_only_kernel(x_ref, mu_ref, lp_ref):
    _logprob_from_mu(x_ref, mu_ref[...], lp_ref)


# --- pallas_call wrappers ------------------------------------------------------
def _weight_specs():
    # scalar-prefetch choice ref is the trailing positional arg of every index_map
    return [
        pl.BlockSpec((pl.Squeezed(), M, HID), lambda i, c: (c[0], 0, 0)),   # w1s
        pl.BlockSpec((pl.Squeezed(), 1, HID), lambda i, c: (c[0], 0, 0)),   # b1s
        pl.BlockSpec((pl.Squeezed(), HID, D), lambda i, c: (c[0], 0, 0)),   # w2s
        pl.BlockSpec((pl.Squeezed(), 1, D), lambda i, c: (c[0], 0, 0)),     # b2s
    ]


def _pallas_decode(choice, z_pad, w1s, b1s, w2s, b2s):
    return pl.pallas_call(
        _decode_kernel,
        out_shape=jax.ShapeDtypeStruct((B_PAD, D), jnp.float32),
        grid_spec=pltpu.PrefetchScalarGridSpec(
            num_scalar_prefetch=1,
            grid=(1,),
            in_specs=[pl.BlockSpec((B_PAD, M), lambda i, c: (0, 0))] + _weight_specs(),
            out_specs=pl.BlockSpec((B_PAD, D), lambda i, c: (0, 0)),
        ),
        compiler_params=pltpu.CompilerParams(dimension_semantics=("arbitrary",)),
    )(choice, z_pad, w1s, b1s, w2s, b2s)


def _pallas_decode_logprob(choice, z_pad, w1s, b1s, w2s, b2s, x_pad):
    return pl.pallas_call(
        _decode_logprob_kernel,
        out_shape=(jax.ShapeDtypeStruct((B_PAD, D), jnp.float32),
                   jax.ShapeDtypeStruct((B_PAD, _LP_LANES), jnp.float32)),
        grid_spec=pltpu.PrefetchScalarGridSpec(
            num_scalar_prefetch=1,
            grid=(1,),
            in_specs=([pl.BlockSpec((B_PAD, M), lambda i, c: (0, 0))]
                      + _weight_specs()
                      + [pl.BlockSpec((B_PAD, D), lambda i, c: (0, 0))]),
            out_specs=(pl.BlockSpec((B_PAD, D), lambda i, c: (0, 0)),
                       pl.BlockSpec((B_PAD, _LP_LANES), lambda i, c: (0, 0))),
        ),
        compiler_params=pltpu.CompilerParams(dimension_semantics=("arbitrary",)),
    )(choice, z_pad, w1s, b1s, w2s, b2s, x_pad)


def _pallas_logprob_only(x_pad, mu_pad):
    return pl.pallas_call(
        _logprob_only_kernel,
        out_shape=jax.ShapeDtypeStruct((B_PAD, _LP_LANES), jnp.float32),
        in_specs=[_VMEM, _VMEM],
        out_specs=_VMEM,
    )(x_pad, mu_pad)


# --- jitted end-to-end paths ----------------------------------------------------
def _pad_rows(a2d):
    return jnp.pad(a2d, ((0, B_PAD - B), (0, 0)))


@jax.jit
def _forward_means(choice_key, z, w1s, b1s, w2s, b2s):
    choice = jax.random.randint(choice_key, (1,), 0, NUM_DECODERS, dtype=jnp.int32)
    means_flat = _pallas_decode(choice, _pad_rows(z), w1s, b1s, w2s, b2s)
    return means_flat[:B].reshape(B, C, IH, IW)


@jax.jit
def _forward_and_logprob(choice_key, z, w1s, b1s, w2s, b2s, x):
    choice = jax.random.randint(choice_key, (1,), 0, NUM_DECODERS, dtype=jnp.int32)
    means_flat, lp_pad = _pallas_decode_logprob(
        choice, _pad_rows(z), w1s, b1s, w2s, b2s, _pad_rows(x.reshape(B, D)))
    return means_flat[:B].reshape(B, C, IH, IW), lp_pad[:B, 0]


@jax.jit
def _logprob_from_means(means, x):
    lp_pad = _pallas_logprob_only(_pad_rows(x.reshape(B, D)),
                                  _pad_rows(means.reshape(B, D)))
    return lp_pad[:B, 0]


# --- distribution object returned by forward() --------------------------------
class IndependentNormal:
    """Lazy stand-in for td.Independent(td.Normal(loc, 0.1), 3)."""

    def __init__(self, choice_key, z, stacked_params, scale):
        self._choice_key = choice_key
        self._z = z
        self._params = stacked_params     # (w1s, b1s, w2s, b2s)
        self.scale = scale
        self._loc = None

    @property
    def loc(self):
        if self._loc is None:
            self._loc = _forward_means(self._choice_key, self._z, *self._params)
        return self._loc

    @property
    def mean(self):
        return self.loc

    def sample(self, key):
        loc = self.loc
        return loc + self.scale * jax.random.normal(key, loc.shape, loc.dtype)

    def log_prob(self, x):
        if self._loc is not None:
            # means already decoded: cheap log_prob-only kernel, no weight DMA
            return _logprob_from_means(self._loc, x)
        # fused decode + log_prob: one pallas_call, means cached for later .mean
        means, lp = _forward_and_logprob(self._choice_key, self._z, *self._params, x)
        self._loc = means
        return lp                          # (B,)


# --- GaussianDecoder -----------------------------------------------------------
class GaussianDecoder:
    def __init__(self, decoder_params: list):
        # stack the ensemble so the decoder index resolves in the BlockSpec
        # index_map (scalar prefetch); weight matrices are bf16 at rest.
        self.params = (
            jnp.stack([p[0] for p in decoder_params]).astype(jnp.bfloat16),  # (N, M, HID)
            jnp.stack([p[1] for p in decoder_params]).astype(jnp.float32),   # (N, 1, HID)
            jnp.stack([p[2] for p in decoder_params]).astype(jnp.bfloat16),  # (N, HID, D)
            jnp.stack([p[3] for p in decoder_params]).astype(jnp.float32),   # (N, 1, D)
        )
        self.num_decoders = len(decoder_params)

    def forward(self, z, choice_key):
        # torch.randint is a host RNG draw; here the choice is drawn on-device
        # (inside the jitted paths) from choice_key — same "pick one decoder
        # uniformly at random" semantics, no host sync.
        return IndependentNormal(choice_key, z, self.params, SCALE)


def init_decoder_params(key):
    """Deterministic init mimicking nn.Linear default (U[-1/sqrt(fan_in), 1/sqrt(fan_in)])."""
    k1, k2, k3, k4 = jax.random.split(key, 4)
    lim1 = 1.0 / math.sqrt(M)
    lim2 = 1.0 / math.sqrt(HID)
    w1 = jax.random.uniform(k1, (M, HID), jnp.float32, -lim1, lim1)
    b1 = jax.random.uniform(k2, (1, HID), jnp.float32, -lim1, lim1)
    w2 = jax.random.uniform(k3, (HID, D), jnp.float32, -lim2, lim2)
    b2 = jax.random.uniform(k4, (1, D), jnp.float32, -lim2, lim2)
    return (w1, b1, w2, b2)


if __name__ == "__main__":
    root = jax.random.PRNGKey(0)
    k_params, k_z, k_choice, k_sample = jax.random.split(root, 4)

    # build ensemble of decoders with deterministic parameters
    param_keys = jax.random.split(k_params, NUM_DECODERS)
    decoder = GaussianDecoder([init_decoder_params(k) for k in param_keys])

    # latent batch z: (B, M)
    z = jax.random.normal(k_z, (B, M), jnp.float32)

    # ---- path A: mean first, then sample, then log_prob (decode runs ONCE) ----
    dist = decoder.forward(z, k_choice)
    means = jax.block_until_ready(dist.mean)                 # (B, 1, 16, 16) decode kernel
    assert means.shape == (B, C, IH, IW)
    x = dist.sample(k_sample)                                # uses cached loc
    lp = jax.block_until_ready(dist.log_prob(x))             # log_prob-only kernel
    assert lp.shape == (B,)

    # ---- path B: log_prob first (fused decode+log_prob), mean from cache ------
    dist2 = decoder.forward(z, k_choice)
    lp2 = jax.block_until_ready(dist2.log_prob(x))           # fused kernel
    means2 = dist2.mean                                      # cached, no kernel
    assert bool(jnp.allclose(means2, means, rtol=1e-5, atol=1e-5))
    assert bool(jnp.allclose(lp2, lp, rtol=1e-4, atol=1e-3))

    # ---- pure-JAX reference check (same on-device choice, bf16-rounded operands)
    w1s, b1s, w2s, b2s = decoder.params
    choice_ref = int(jax.random.randint(k_choice, (1,), 0, NUM_DECODERS, dtype=jnp.int32)[0])
    hi = jax.lax.Precision.HIGHEST
    z_r = z.astype(jnp.bfloat16).astype(jnp.float32)
    w1_r = w1s[choice_ref].astype(jnp.float32)
    w2_r = w2s[choice_ref].astype(jnp.float32)
    h_ref = jnp.maximum(jnp.dot(z_r, w1_r, precision=hi) + b1s[choice_ref], 0.0)
    h_r = h_ref.astype(jnp.bfloat16).astype(jnp.float32)
    mu_ref = (jnp.dot(h_r, w2_r, precision=hi) + b2s[choice_ref]).reshape(B, C, IH, IW)
    lp_ref = jnp.sum(
        -0.5 * ((x - mu_ref) / SCALE) ** 2 - math.log(SCALE) - 0.5 * math.log(2.0 * math.pi),
        axis=(1, 2, 3))
    assert bool(jnp.allclose(means, mu_ref, rtol=1e-2, atol=1e-2))
    assert bool(jnp.allclose(lp, lp_ref, rtol=2e-2, atol=1.0))
    assert bool(jnp.all(jnp.isfinite(means))) and bool(jnp.all(jnp.isfinite(lp)))

    print("KERNEL_OK")
</pallas_src>

<mosaic_0001>
module attributes {stable_mosaic.version = 11 : i64} {
  func.func @_decode_kernel(%arg0: i32, %arg1: memref<1xi32, #tpu.memory_space<smem>>, %arg2: memref<8x8xf32, #tpu.memory_space<vmem>>, %arg3: memref<1x8x32xbf16, #tpu.memory_space<vmem>>, %arg4: memref<1x1x32xf32, #tpu.memory_space<vmem>>, %arg5: memref<1x32x256xbf16, #tpu.memory_space<vmem>>, %arg6: memref<1x1x256xf32, #tpu.memory_space<vmem>>, %arg7: memref<8x256xf32, #tpu.memory_space<vmem>>) attributes {dimension_semantics = [#tpu.dimension_semantics<arbitrary>], iteration_bounds = array<i64: 1>, scalar_prefetch = 1 : i64, scratch_operands = 0 : i64, tpu.core_type = #tpu.core_type<tc>, window_params = [{pipeline_mode = #tpu.pipeline_mode<synchronous>, transform_indices = @transform_0, window_bounds = array<i64: 8, 8>}, {transform_indices = @transform_1, window_bounds = array<i64: 1, 8, 32>}, {transform_indices = @transform_2, window_bounds = array<i64: 1, 1, 32>}, {transform_indices = @transform_3, window_bounds = array<i64: 1, 32, 256>}, {transform_indices = @transform_4, window_bounds = array<i64: 1, 1, 256>}, {pipeline_mode = #tpu.pipeline_mode<synchronous>, transform_indices = @transform_5, window_bounds = array<i64: 8, 256>}]} {
    %c0 = arith.constant 0 : index
    %c0_0 = arith.constant 0 : index
    %0 = vector.load %arg2[%c0, %c0_0] : memref<8x8xf32, #tpu.memory_space<vmem>>, vector<8x8xf32>
    %1 = arith.truncf %0 : vector<8x8xf32> to vector<8x8xbf16>
    %c0_1 = arith.constant 0 : index
    %c0_2 = arith.constant 0 : index
    %c0_3 = arith.constant 0 : index
    %2 = vector.load %arg3[%c0_1, %c0_2, %c0_3] : memref<1x8x32xbf16, #tpu.memory_space<vmem>>, vector<1x8x32xbf16>
    %3 = vector.shape_cast %2 : vector<1x8x32xbf16> to vector<8x32xbf16>
    %cst = arith.constant dense<0.000000e+00> : vector<8x32xf32>
    %4 = tpu.matmul %1, %3, %cst {dimension_numbers = #tpu.dot_dimension_numbers<[1], [0], [0], [1], [0, 0, 1, 1], [], []>} : vector<8x8xbf16>, vector<8x32xbf16>, vector<8x32xf32> -> vector<8x32xf32>
    %c0_4 = arith.constant 0 : index
    %c0_5 = arith.constant 0 : index
    %c0_6 = arith.constant 0 : index
    %5 = vector.load %arg4[%c0_4, %c0_5, %c0_6] : memref<1x1x32xf32, #tpu.memory_space<vmem>>, vector<1x1x32xf32>
    %6 = vector.shape_cast %5 : vector<1x1x32xf32> to vector<1x32xf32>
    %7 = vector.broadcast %6 : vector<1x32xf32> to vector<8x32xf32>
    %8 = arith.addf %4, %7 : vector<8x32xf32>
    %cst_7 = arith.constant 0.000000e+00 : f32
    %9 = vector.broadcast %cst_7 : f32 to vector<8x32xf32>
    %10 = arith.maximumf %8, %9 : vector<8x32xf32>
    %11 = arith.truncf %10 : vector<8x32xf32> to vector<8x32xbf16>
    %c0_8 = arith.constant 0 : index
    %c0_9 = arith.constant 0 : index
    %c0_10 = arith.constant 0 : index
    %12 = vector.load %arg5[%c0_8, %c0_9, %c0_10] : memref<1x32x256xbf16, #tpu.memory_space<vmem>>, vector<1x32x256xbf16>
    %13 = vector.shape_cast %12 : vector<1x32x256xbf16> to vector<32x256xbf16>
    %cst_11 = arith.constant dense<0.000000e+00> : vector<8x256xf32>
    %14 = tpu.matmul %11, %13, %cst_11 {dimension_numbers = #tpu.dot_dimension_numbers<[1], [0], [0], [1], [0, 0, 1, 1], [], []>} : vector<8x32xbf16>, vector<32x256xbf16>, vector<8x256xf32> -> vector<8x256xf32>
    %c0_12 = arith.constant 0 : index
    %c0_13 = arith.constant 0 : index
    %c0_14 = arith.constant 0 : index
    %15 = vector.load %arg6[%c0_12, %c0_13, %c0_14] : memref<1x1x256xf32, #tpu.memory_space<vmem>>, vector<1x1x256xf32>
    %16 = vector.shape_cast %15 : vector<1x1x256xf32> to vector<1x256xf32>
    %17 = vector.broadcast %16 : vector<1x256xf32> to vector<8x256xf32>
    %18 = arith.addf %14, %17 : vector<8x256xf32>
    %c0_15 = arith.constant 0 : index
    %c0_16 = arith.constant 0 : index
    %19 = vector.load %arg7[%c0_15, %c0_16] : memref<8x256xf32, #tpu.memory_space<vmem>>, vector<8x256xf32>
    tpu.vector_store %arg7[%c0_15, %c0_16], %18 {strides = array<i32>} : memref<8x256xf32, #tpu.memory_space<vmem>>, vector<8x256xf32>,
    return
  }
  func.func @transform_0(%arg0: i32, %arg1: memref<1xi32, #tpu.memory_space<smem>>) -> (i32, i32) {
    %c0_i32 = arith.constant 0 : i32
    %c0_i32_0 = arith.constant 0 : i32
    %c0_i32_1 = arith.constant 0 : i32
    return %c0_i32, %c0_i32_0 : i32, i32
  }
  func.func @transform_1(%arg0: i32, %arg1: memref<1xi32, #tpu.memory_space<smem>>) -> (i32, i32, i32) {
    %c0 = arith.constant 0 : index
    %0 = memref.load %arg1[%c0] : memref<1xi32, #tpu.memory_space<smem>>
    %c0_i32 = arith.constant 0 : i32
    %c0_i32_0 = arith.constant 0 : i32
    %c0_i32_1 = arith.constant 0 : i32
    return %0, %c0_i32, %c0_i32_0 : i32, i32, i32
  }
  func.func @transform_2(%arg0: i32, %arg1: memref<1xi32, #tpu.memory_space<smem>>) -> (i32, i32, i32) {
    %c0 = arith.constant 0 : index
    %0 = memref.load %arg1[%c0] : memref<1xi32, #tpu.memory_space<smem>>
    %c0_i32 = arith.constant 0 : i32
    %c0_i32_0 = arith.constant 0 : i32
    %c0_i32_1 = arith.constant 0 : i32
    return %0, %c0_i32, %c0_i32_0 : i32, i32, i32
  }
  func.func @transform_3(%arg0: i32, %arg1: memref<1xi32, #tpu.memory_space<smem>>) -> (i32, i32, i32) {
    %c0 = arith.constant 0 : index
    %0 = memref.load %arg1[%c0] : memref<1xi32, #tpu.memory_space<smem>>
    %c0_i32 = arith.constant 0 : i32
    %c0_i32_0 = arith.constant 0 : i32
    %c0_i32_1 = arith.constant 0 : i32
    return %0, %c0_i32, %c0_i32_0 : i32, i32, i32
  }
  func.func @transform_4(%arg0: i32, %arg1: memref<1xi32, #tpu.memory_space<smem>>) -> (i32, i32, i32) {
    %c0 = arith.constant 0 : index
    %0 = memref.load %arg1[%c0] : memref<1xi32, #tpu.memory_space<smem>>
    %c0_i32 = arith.constant 0 : i32
    %c0_i32_0 = arith.constant 0 : i32
    %c0_i32_1 = arith.constant 0 : i32
    return %0, %c0_i32, %c0_i32_0 : i32, i32, i32
  }
  func.func @transform_5(%arg0: i32, %arg1: memref<1xi32, #tpu.memory_space<smem>>) -> (i32, i32) {
    %c0_i32 = arith.constant 0 : i32
    %c0_i32_0 = arith.constant 0 : i32
    %c0_i32_1 = arith.constant 0 : i32
    return %c0_i32, %c0_i32_0 : i32, i32
  }
}

</mosaic_0001>

<llo_original>
// kernel: _forward_means.1
$region0: #{_forward_means.1}
  #allocation0 [shape = 'u32[]', space=smem, size = 0x4, offset = 0x4, fixed_abs, tag = 'smem constant byte address 0x4 - core index']
  #allocation1 [shape = 'u32[144,128]{1,0:T(1,128)}', space=vmem, size = 0x12000, scoped, tag = 'internal scratch']
  #allocation2 [shape = 's32[1]{0}', space=sflag, size = 0x4, scoped, tag = 'scoped memory for _forward_means.1']
  #allocation3 [shape = 's32[1]{0:T(128)S(6)}', space=smem, size = 0x200, scoped, tag = 'prefetched SMEM operand 0']
  %s0 = inlined_call_operand.<no memory space> [shape: s32[1], index: 0, kind: input, shape index: {}]
  %s1 = inlined_call_operand.vmem [shape: f32[8,8], index: 1, kind: input, shape index: {}]
  %s2 = inlined_call_operand.vmem [shape: bf16[3,8,32], index: 2, kind: input, shape index: {}]
  %s3 = inlined_call_operand.vmem [shape: f32[3,1,32], index: 3, kind: input, shape index: {}]
  %s4 = inlined_call_operand.vmem [shape: bf16[3,32,256], index: 4, kind: input, shape index: {}]
  %s5 = inlined_call_operand.vmem [shape: f32[3,1,256], index: 5, kind: input, shape index: {}]
  %s6 = inlined_call_operand.vmem [shape: f32[8,256], index: 6, kind: output, shape index: {}]
  %s7 = sld [smem:[#allocation0]]
  $region30: #{_forward_means.1} parent=0
    _
  %s9 = ssub.s32 1, %s7
  %s10 = scalar_select 0, %s9, %s7
  %11 = sst [smem:[#allocation3]] %s0
  // Predicated region
  $region2: #{_forward_means.1} parent=0 // pred_check
    _
  $region3: #{_forward_means.1} parent=0 // pred_check_branch
    %13 = sbr.rel (0) target = $region5
  $region4: #{_forward_means.1} parent=0 // pred_region
    _
  $region5: #{_forward_means.1} parent=0 // pred_fallthru
    _
  // Predicated region
  $region6: #{_forward_means.1} parent=0 // pred_check
    _
  $region7: #{_forward_means.1} parent=0 // pred_check_branch
    %15 = sbr.rel (0) target = $region9
  $region8: #{_forward_means.1} parent=0 // pred_region
    %s16 = sld [smem:[#allocation3]]
    %p17 = scmp.lt.s32.totalorder %s16, 2
    %s18 = scalar_select %p17, %s16, 2
    %s19 = smul.addr %s18, 4
    %s20 = scalar_lea.vmem %s2, %s19
    %s21 = sld [smem:[#allocation3]]
  $region9: #{_forward_means.1} parent=0 // pred_fallthru
    _
  // Predicated region
  $region10: #{_forward_means.1} parent=0 // pred_check
    _
  $region11: #{_forward_means.1} parent=0 // pred_check_branch
    %23 = sbr.rel (0) target = $region13
  $region12: #{_forward_means.1} parent=0 // pred_region
    %s24 = sld [smem:[#allocation3]]
    %p25 = scmp.lt.s32.totalorder %s24, 2
    %s26 = scalar_select %p25, %s24, 2
    %s27 = scalar_lea.vmem %s3, %s26
    %s28 = sld [smem:[#allocation3]]
  $region13: #{_forward_means.1} parent=0 // pred_fallthru
    _
  // Predicated region
  $region14: #{_forward_means.1} parent=0 // pred_check
    _
  $region15: #{_forward_means.1} parent=0 // pred_check_branch
    %30 = sbr.rel (0) target = $region17
  $region16: #{_forward_means.1} parent=0 // pred_region
    %s31 = sld [smem:[#allocation3]]
    %p32 = scmp.lt.s32.totalorder %s31, 2
    %s33 = scalar_select %p32, %s31, 2
    %s34 = smul.addr %s33, 8
    %s35 = smul.addr %s34, 4
    %s36 = scalar_lea.vmem %s4, %s35
    %s37 = sld [smem:[#allocation3]]
  $region17: #{_forward_means.1} parent=0 // pred_fallthru
    _
  // Predicated region
  $region18: #{_forward_means.1} parent=0 // pred_check
    _
  $region19: #{_forward_means.1} parent=0 // pred_check_branch
    %39 = sbr.rel (0) target = $region21
  $region20: #{_forward_means.1} parent=0 // pred_region
    %s40 = sld [smem:[#allocation3]]
    %p41 = scmp.lt.s32.totalorder %s40, 2
    %s42 = scalar_select %p41, %s40, 2
    %s43 = smul.addr %s42, 2
    %s44 = scalar_lea.vmem %s5, %s43
    %s45 = sld [smem:[#allocation3]]
  $region21: #{_forward_means.1} parent=0 // pred_fallthru
    _
  %s46 = sld [smem:[#allocation3]]
  %p47 = scmp.lt.s32.totalorder %s46, 2
  %s48 = scalar_select %p47, %s46, 2
  %s49 = smul.addr %s48, 4
  %s50 = scalar_lea.vmem %s2, %s49
  %s51 = sld [smem:[#allocation3]]
  %p52 = scmp.lt.s32.totalorder %s51, 2
  %s53 = scalar_select %p52, %s51, 2
  %s54 = scalar_lea.vmem %s3, %s53
  %s55 = sld [smem:[#allocation3]]
  %p56 = scmp.lt.s32.totalorder %s55, 2
  %s57 = scalar_select %p56, %s55, 2
  %s58 = smul.addr %s57, 8
  %s59 = smul.addr %s58, 4
  %s60 = scalar_lea.vmem %s4, %s59
  %s61 = sld [smem:[#allocation3]]
  %p62 = scmp.lt.s32.totalorder %s61, 2
  %s63 = scalar_select %p62, %s61, 2
  %s64 = smul.addr %s63, 2
  %s65 = scalar_lea.vmem %s5, %s64
  %s66 = sld [smem:[#allocation3]]
  %p67 = scmp.lt.s32.totalorder %s66, 2
  %s68 = scalar_select %p67, %s66, 2
  %s69 = smul.addr %s68, 4
  %s70 = scalar_lea.vmem %s2, %s69
  %s71 = sld [smem:[#allocation3]]
  %s72 = sld [smem:[#allocation3]]
  %p73 = scmp.lt.s32.totalorder %s72, 2
  %s74 = scalar_select %p73, %s72, 2
  %s75 = scalar_lea.vmem %s3, %s74
  %s76 = sld [smem:[#allocation3]]
  %s77 = sld [smem:[#allocation3]]
  %p78 = scmp.lt.s32.totalorder %s77, 2
  %s79 = scalar_select %p78, %s77, 2
  %s80 = smul.addr %s79, 8
  %s81 = smul.addr %s80, 4
  %s82 = scalar_lea.vmem %s4, %s81
  %s83 = sld [smem:[#allocation3]]
  %s84 = sld [smem:[#allocation3]]
  %p85 = scmp.lt.s32.totalorder %s84, 2
  %s86 = scalar_select %p85, %s84, 2
  %s87 = smul.addr %s86, 2
  %s88 = scalar_lea.vmem %s5, %s87
  %s89 = sld [smem:[#allocation3]]
  %v91 = vld [vmem:[%s1] sm:$0xff]
  %v92 = vpack.c.bf16 %v91, %v91
  %v93 = vld [vmem:[%s70] sm:$0xf]
  %v94 = vld [vmem:[%s75] sm:$0x1]
  %v96 = vlaneseq
  %v97 = vshrl.u32 %v96, 7
  %v98 = vsub.s32 0, %v97
  %v99 = vrot.slane %v94, %v98
  %vm101 = vcmask 64512
  %v103 = vsel %vm101, %v92, 0
  %vm105 = vcmask 1043456
  %v107 = vsel %vm105, %v93, 0
  %109 = vmatprep.subr.bf16.mxu0 0
  %110 = vmatpush1.bf16.msra.mxu0 %v107
  %111 = vmatprep.subr.bf16.mxu0 0
  %112 = vmatpush1.bf16.msra.mxu0 0
  %113 = vmatprep.subr.bf16.mxu0 0
  %114 = vmatpush1.bf16.msra.mxu0 0
  %115 = vmatprep.subr.bf16.mxu0 0
  %116 = vmatpush1.bf16.msra.mxu0 0
  %117 = vmatprep.subr.bf16.mxu0 0
  %118 = vmatpush1.bf16.msra.mxu0 0
  %119 = vmatprep.subr.bf16.mxu0 0
  %120 = vmatpush1.bf16.msra.mxu0 0
  %121 = vmatprep.subr.bf16.mxu0 0
  %122 = vmatpush1.bf16.msra.mxu0 0
  %123 = vmatprep.subr.bf16.mxu0 0
  %124 = vmatpush1.bf16.msra.mxu0 0
  %125 = vmatprep.subr.bf16.mxu0 0
  %126 = vmatpush1.bf16.msra.mxu0 0
  %127 = vmatprep.subr.bf16.mxu0 0
  %128 = vmatpush1.bf16.msra.mxu0 0
  %129 = vmatprep.subr.bf16.mxu0 0
  %130 = vmatpush1.bf16.msra.mxu0 0
  %131 = vmatprep.subr.bf16.mxu0 0
  %132 = vmatpush1.bf16.msra.mxu0 0
  %133 = vmatprep.subr.bf16.mxu0 0
  %134 = vmatpush1.bf16.msra.mxu0 0
  %135 = vmatprep.subr.bf16.mxu0 0
  %136 = vmatpush1.bf16.msra.mxu0 0
  %137 = vmatprep.subr.bf16.mxu0 0
  %138 = vmatpush1.bf16.msra.mxu0 0
  %139 = vmatprep.subr.bf16.mxu0 0
  %140 = vmatpush1.bf16.msra.mxu0 0
  %141 = vmatprep.mubr.bf16.mxu0 0
  %142 = vmatmul.mubr.bf16.gmra.mrb[0].mxu0 %v103
  %v143 = vpop.f32.mrb[0].mxu0
  %v144 = vadd.f32 %v99, %v143
  %v145 = vpop.f32.mrb[0].mxu0
  %v146 = vpop.f32.mrb[0].mxu0
  %v147 = vpop.f32.mrb[0].mxu0
  %148 = vdwg.mxu0
  %v149 = vmax.f32 %v144, 0.0
  %v150 = vpack.c.bf16 %v149, %v149
  %v151 = vld [vmem:[%s82] sm:$0xff]
  %v152 = vld [vmem:[%s82 + $0x8] sm:$0xff]
  %v153 = vld [vmem:[%s82 + $0x10] sm:$0xff]
  %v154 = vld [vmem:[%s82 + $0x18] sm:$0xff]
  %v155 = vld [vmem:[%s88] sm:$0x3]
  %v157 = vlaneseq
  %v158 = vshrl.u32 %v157, 7
  %v159 = vsub.s32 0, %v158
  %v160 = vrot.slane %v155, %v159
  %v161 = vlaneseq
  %v162 = vshrl.u32 %v161, 7
  %v163 = vsub.s32 1, %v162
  %v164 = vrot.slane %v155, %v163
  %v171 = vunpack.c.l.b16 %v151
  %v172 = vunpack.c.h.b16 %v151
  %v173 = vunpack.c.l.b16 %v152
  %v174 = vunpack.c.h.b16 %v152
  %v175 = vunpack.c.l.b16 %v153
  %v176 = vunpack.c.h.b16 %v153
  %v177 = vunpack.c.l.b16 %v154
  %v178 = vunpack.c.h.b16 %v154
  %v179 = vpack.c.b16 %v173, %v171
  %v180 = vpack.c.b16 %v174, %v172
  %v181 = vpack.c.b16 %v177, %v175
  %v182 = vpack.c.b16 %v178, %v176
  %vm187 = vcmask 261120
  %v189 = vsel %vm187, %v150, 0
  %191 = vmatprep.subr.bf16.mxu0 %v180
  %192 = vmatpush1.bf16.msra.mxu0 %v179
  %193 = vmatprep.subr.bf16.mxu0 %v182
  %194 = vmatpush1.bf16.msra.mxu0 %v181
  %195 = vmatprep.subr.bf16.mxu0 0
  %196 = vmatpush1.bf16.msra.mxu0 0
  %197 = vmatprep.subr.bf16.mxu0 0
  %198 = vmatpush1.bf16.msra.mxu0 0
  %199 = vmatprep.subr.bf16.mxu0 0
  %200 = vmatpush1.bf16.msra.mxu0 0
  %201 = vmatprep.subr.bf16.mxu0 0
  %202 = vmatpush1.bf16.msra.mxu0 0
  %203 = vmatprep.subr.bf16.mxu0 0
  %204 = vmatpush1.bf16.msra.mxu0 0
  %205 = vmatprep.subr.bf16.mxu0 0
  %206 = vmatpush1.bf16.msra.mxu0 0
  %207 = vmatprep.subr.bf16.mxu0 0
  %208 = vmatpush1.bf16.msra.mxu0 0
  %209 = vmatprep.subr.bf16.mxu0 0
  %210 = vmatpush1.bf16.msra.mxu0 0
  %211 = vmatprep.subr.bf16.mxu0 0
  %212 = vmatpush1.bf16.msra.mxu0 0
  %213 = vmatprep.subr.bf16.mxu0 0
  %214 = vmatpush1.bf16.msra.mxu0 0
  %215 = vmatprep.subr.bf16.mxu0 0
  %216 = vmatpush1.bf16.msra.mxu0 0
  %217 = vmatprep.subr.bf16.mxu0 0
  %218 = vmatpush1.bf16.msra.mxu0 0
  %219 = vmatprep.subr.bf16.mxu0 0
  %220 = vmatpush1.bf16.msra.mxu0 0
  %221 = vmatprep.subr.bf16.mxu0 0
  %222 = vmatpush1.bf16.msra.mxu0 0
  %223 = vmatprep.mubr.bf16.mxu0 0
  %224 = vmatmul.mubr.bf16.gmra.mrb[0].mxu0 %v189
  %v225 = vpop.f32.mrb[0].mxu0
  %v226 = vadd.f32 %v160, %v225
  %v227 = vpop.f32.mrb[0].mxu0
  %v228 = vadd.f32 %v164, %v227
  %v229 = vpop.f32.mrb[0].mxu0
  %v230 = vpop.f32.mrb[0].mxu0
  %231 = vdwg.mxu0
  %232 = vst [vmem:[%s6] sm:$0xff] %v226
  %233 = vst [vmem:[%s6 + $0x8] sm:$0xff] %v228
  // Predicated region
  $region22: #{_forward_means.1} parent=0 // pred_check
    _
  $region23: #{_forward_means.1} parent=0 // pred_check_branch
    %235 = sbr.rel (0) target = $region25
  $region24: #{_forward_means.1} parent=0 // pred_region
    _
  $region25: #{_forward_means.1} parent=0 // pred_fallthru
    _
  // Predicated region
  $region26: #{_forward_means.1} parent=0 // pred_check
    _
  $region27: #{_forward_means.1} parent=0 // pred_check_branch
    %237 = sbr.rel (0) target = $region29
  $region28: #{_forward_means.1} parent=0 // pred_region
    _
  $region29: #{_forward_means.1} parent=0 // pred_fallthru
    _

</llo_original>
